<compile_context>
chip_gen: v7x
topology: tpu7x:2x2x1
jax: 0.10.0
libtpu: 0.0.40
codegen_flags: <defaults>
</compile_context>

<pallas_src>
import math
from functools import partial

import jax
import jax.numpy as jnp
from jax import lax
from jax.experimental import pallas as pl
from jax.experimental.pallas import tpu as pltpu

_EPS = 1e-12          # torch.nn.functional.normalize default eps
_LANE = 128
_SUBLANE = 8
_DEFAULT_TILE_C = 512


def _round_up(x, m):
    return (x + m - 1) // m * m


def _arc_margin_kernel(x_ref, w_ref, o_ref, *, compute_dtype):
    # x_ref: (TB, D)        features (f32)
    # w_ref: (k, D, TILE_C) sub-center weights, [j, :, c] == weight[c*k + j, :]
    # o_ref: (TB, TILE_C)   max-over-subcenters cosine (f32)
    x_f32 = x_ref[...].astype(jnp.float32)

    # 1 / max(||x||, eps) as a (TB, 1) column; applied to the matmul output
    # instead of normalizing the operand (rsqrt goes to the EUP slot).
    x_inv = lax.rsqrt(
        jnp.maximum(jnp.sum(x_f32 * x_f32, axis=-1, keepdims=True), _EPS * _EPS))

    x_mxu = x_ref[...].astype(compute_dtype)

    k = w_ref.shape[0]
    acc = None
    for j in range(k):  # k is a small static constant (e.g. 3) -> unrolled
        wj = w_ref[j]                                   # (D, TILE_C), classes lane-dense
        wj_f32 = wj.astype(jnp.float32)
        # 1 / max(||w_c||, eps) per class column, applied to the output.
        w_inv = lax.rsqrt(
            jnp.maximum(jnp.sum(wj_f32 * wj_f32, axis=0, keepdims=True),
                        _EPS * _EPS))                   # (1, TILE_C)
        raw = jnp.dot(x_mxu, wj.astype(compute_dtype),
                      preferred_element_type=jnp.float32)  # (TB, TILE_C) on the MXU
        cos_j = raw * w_inv
        acc = cos_j if acc is None else jnp.maximum(acc, cos_j)

    o_ref[...] = (acc * x_inv).astype(o_ref.dtype)


def prepare_subcenter_weight(weight, out_features, k, *,
                             tile_c=_DEFAULT_TILE_C, dtype=jnp.bfloat16):
    """One-time weight regrouping: (C*k, D) -> (k, D, C_pad), classes lane-dense.

    Call this ONCE at parameter-init time (not per forward) — it is a full
    copy of the weight. Padded class columns are zero.
    Returns (prepared_weight, tile_c).
    """
    ck, d = weight.shape
    assert ck == out_features * k
    tile_c = min(_round_up(tile_c, _LANE), _round_up(out_features, _LANE))
    c_pad = _round_up(out_features, tile_c)
    # weight[c*k + j, :]  ->  w[j, :, c]
    w = weight.reshape(out_features, k, d).transpose(1, 2, 0)   # (k, D, C)
    w = jnp.pad(w, ((0, 0), (0, 0), (0, c_pad - out_features)))
    return w.astype(dtype), tile_c


def arc_margin_product_subcenter_prepared(features, w_prepared, out_features, *,
                                          tile_c, compute_dtype=jnp.bfloat16,
                                          tile_b=128):
    """features: (B, D); w_prepared: (k, D, C_pad) from prepare_subcenter_weight."""
    B, D = features.shape
    k, d_w, c_pad = w_prepared.shape
    assert d_w == D
    assert c_pad % tile_c == 0 and tile_c % _LANE == 0
    assert tile_b % _SUBLANE == 0

    # Batch tiling: sublane-aligned, D kept whole in every block.
    if B <= tile_b:
        tb = _round_up(B, _SUBLANE)
        b_pad = tb
    else:
        tb = tile_b
        b_pad = _round_up(B, tb)
    if b_pad != B:
        features = jnp.pad(features, ((0, b_pad - B), (0, 0)))

    grid = (b_pad // tb, c_pad // tile_c)
    kernel = partial(_arc_margin_kernel, compute_dtype=compute_dtype)

    out = pl.pallas_call(
        kernel,
        out_shape=jax.ShapeDtypeStruct((b_pad, c_pad), jnp.float32),
        grid_spec=pltpu.PrefetchScalarGridSpec(
            num_scalar_prefetch=0,
            grid=grid,
            in_specs=[
                # Features block is re-used across all class tiles (same block
                # index along c), so it is not re-fetched.
                pl.BlockSpec((tb, D), lambda b, c: (b, 0)),
                # Weight streams class-tile by class-tile (double-buffered DMA).
                pl.BlockSpec((k, D, tile_c), lambda b, c: (0, 0, c)),
            ],
            out_specs=pl.BlockSpec((tb, tile_c), lambda b, c: (b, c)),
        ),
        compiler_params=pltpu.CompilerParams(
            dimension_semantics=("parallel", "parallel")),
    )(features, w_prepared)

    return out[:B, :out_features]


def arc_margin_product_subcenter(features, weight, out_features, k=3, *,
                                 compute_dtype=jnp.bfloat16,
                                 tile_c=_DEFAULT_TILE_C, tile_b=128):
    """Convenience wrapper: regroups the weight then calls the tiled kernel.

    NOTE: for real use, call prepare_subcenter_weight() once at init and use
    arc_margin_product_subcenter_prepared() per forward (avoids a per-call
    full-weight transpose copy).
    """
    w_prep, tile_c = prepare_subcenter_weight(
        weight, out_features, k, tile_c=tile_c, dtype=compute_dtype)
    return arc_margin_product_subcenter_prepared(
        features, w_prep, out_features, tile_c=tile_c,
        compute_dtype=compute_dtype, tile_b=tile_b)


def _reference(features, weight, out_features, k):
    def l2n(v):
        n = jnp.sqrt(jnp.sum(v * v, axis=-1, keepdims=True))
        return v / jnp.maximum(n, _EPS)

    cos_all = l2n(features) @ l2n(weight).T           # (B, C*k)
    cos_all = cos_all.reshape(-1, out_features, k)    # (B, C, k)
    return jnp.max(cos_all, axis=2)                   # (B, C)


if __name__ == "__main__":
    # ---- Config 1: small shapes matching the module's forward --------------
    B, in_features, out_features, k = 8, 32, 16, 3

    key = jax.random.PRNGKey(0)
    kx, kw, kx2, kw2 = jax.random.split(key, 4)

    features = jax.random.normal(kx, (B, in_features), dtype=jnp.float32)
    # Deterministic init matching reset_parameters(): U(-stdv, stdv).
    stdv = 1.0 / math.sqrt(in_features)
    weight = jax.random.uniform(
        kw, (out_features * k, in_features), dtype=jnp.float32,
        minval=-stdv, maxval=stdv)

    ref = _reference(features, weight, out_features, k)

    # f32 compute path: strict semantic check.
    w32, tc32 = prepare_subcenter_weight(weight, out_features, k, dtype=jnp.float32)
    out_f32 = arc_margin_product_subcenter_prepared(
        features, w32, out_features, tile_c=tc32, compute_dtype=jnp.float32)
    out_f32 = jax.block_until_ready(out_f32)
    assert out_f32.shape == (B, out_features)
    assert jnp.allclose(out_f32, ref, atol=1e-4, rtol=1e-4)

    # bf16 MXU path (default): looser tolerance for bf16 operand quantization.
    out_bf16 = arc_margin_product_subcenter(features, weight, out_features, k)
    out_bf16 = jax.block_until_ready(out_bf16)
    assert out_bf16.shape == (B, out_features)
    assert jnp.allclose(out_bf16, ref, atol=2e-2, rtol=2e-2)

    # ---- Config 2: exercises multi-tile grid + B/C padding ------------------
    B2, D2, C2, k2 = 20, 128, 300, 3
    features2 = jax.random.normal(kx2, (B2, D2), dtype=jnp.float32)
    stdv2 = 1.0 / math.sqrt(D2)
    weight2 = jax.random.uniform(
        kw2, (C2 * k2, D2), dtype=jnp.float32, minval=-stdv2, maxval=stdv2)

    ref2 = _reference(features2, weight2, C2, k2)
    out2 = arc_margin_product_subcenter(
        features2, weight2, C2, k2, tile_c=128, tile_b=8)   # grid = (3, 3)
    out2 = jax.block_until_ready(out2)
    assert out2.shape == (B2, C2)
    assert jnp.allclose(out2, ref2, atol=2e-2, rtol=2e-2)

    print("KERNEL_OK")
</pallas_src>

<mosaic_0001>
module attributes {stable_mosaic.version = 11 : i64} {
  func.func @_arc_margin_kernel(%arg0: i32, %arg1: i32, %arg2: memref<8x32xf32, #tpu.memory_space<vmem>>, %arg3: memref<3x32x128xf32, #tpu.memory_space<vmem>>, %arg4: memref<8x128xf32, #tpu.memory_space<vmem>>) attributes {dimension_semantics = [#tpu.dimension_semantics<parallel>, #tpu.dimension_semantics<parallel>], iteration_bounds = array<i64: 1, 1>, scalar_prefetch = 0 : i64, scratch_operands = 0 : i64, tpu.core_type = #tpu.core_type<tc>, window_params = [{transform_indices = @transform_0, window_bounds = array<i64: 8, 32>}, {transform_indices = @transform_1, window_bounds = array<i64: 3, 32, 128>}, {transform_indices = @transform_2, window_bounds = array<i64: 8, 128>}]} {
    %c0 = arith.constant 0 : index
    %c0_0 = arith.constant 0 : index
    %0 = vector.load %arg2[%c0, %c0_0] : memref<8x32xf32, #tpu.memory_space<vmem>>, vector<8x32xf32>
    %1 = arith.mulf %0, %0 : vector<8x32xf32>
    %cst = arith.constant dense<0.000000e+00> : vector<8xf32>
    %2 = vector.multi_reduction <add>, %1, %cst [1] : vector<8x32xf32> to vector<8xf32>
    %3 = vector.shape_cast %2 : vector<8xf32> to vector<8x1xf32>
    %cst_1 = arith.constant 1.000000e-24 : f32
    %4 = vector.broadcast %cst_1 : f32 to vector<8x1xf32>
    %5 = arith.maximumf %3, %4 : vector<8x1xf32>
    %6 = math.rsqrt %5 : vector<8x1xf32>
    %c0_2 = arith.constant 0 : index
    %c0_3 = arith.constant 0 : index
    %7 = vector.load %arg2[%c0_2, %c0_3] : memref<8x32xf32, #tpu.memory_space<vmem>>, vector<8x32xf32>
    %c0_4 = arith.constant 0 : index
    %c0_5 = arith.constant 0 : index
    %c0_6 = arith.constant 0 : index
    %8 = vector.load %arg3[%c0_4, %c0_5, %c0_6] : memref<3x32x128xf32, #tpu.memory_space<vmem>>, vector<1x32x128xf32>
    %9 = vector.shape_cast %8 : vector<1x32x128xf32> to vector<32x128xf32>
    %10 = arith.mulf %9, %9 : vector<32x128xf32>
    %cst_7 = arith.constant dense<0.000000e+00> : vector<128xf32>
    %11 = vector.multi_reduction <add>, %10, %cst_7 [0] : vector<32x128xf32> to vector<128xf32>
    %12 = vector.shape_cast %11 : vector<128xf32> to vector<1x128xf32>
    %cst_8 = arith.constant 1.000000e-24 : f32
    %13 = vector.broadcast %cst_8 : f32 to vector<1x128xf32>
    %14 = arith.maximumf %12, %13 : vector<1x128xf32>
    %15 = math.rsqrt %14 : vector<1x128xf32>
    %cst_9 = arith.constant dense<0.000000e+00> : vector<8x128xf32>
    %16 = tpu.matmul %7, %9, %cst_9 {dimension_numbers = #tpu.dot_dimension_numbers<[1], [0], [0], [1], [0, 0, 1, 1], [], []>} : vector<8x32xf32>, vector<32x128xf32>, vector<8x128xf32> -> vector<8x128xf32>
    %17 = vector.broadcast %15 : vector<1x128xf32> to vector<8x128xf32>
    %18 = arith.mulf %16, %17 : vector<8x128xf32>
    %c1 = arith.constant 1 : index
    %c0_10 = arith.constant 0 : index
    %c0_11 = arith.constant 0 : index
    %19 = vector.load %arg3[%c1, %c0_10, %c0_11] : memref<3x32x128xf32, #tpu.memory_space<vmem>>, vector<1x32x128xf32>
    %20 = vector.shape_cast %19 : vector<1x32x128xf32> to vector<32x128xf32>
    %21 = arith.mulf %20, %20 : vector<32x128xf32>
    %cst_12 = arith.constant dense<0.000000e+00> : vector<128xf32>
    %22 = vector.multi_reduction <add>, %21, %cst_12 [0] : vector<32x128xf32> to vector<128xf32>
    %23 = vector.shape_cast %22 : vector<128xf32> to vector<1x128xf32>
    %cst_13 = arith.constant 1.000000e-24 : f32
    %24 = vector.broadcast %cst_13 : f32 to vector<1x128xf32>
    %25 = arith.maximumf %23, %24 : vector<1x128xf32>
    %26 = math.rsqrt %25 : vector<1x128xf32>
    %cst_14 = arith.constant dense<0.000000e+00> : vector<8x128xf32>
    %27 = tpu.matmul %7, %20, %cst_14 {dimension_numbers = #tpu.dot_dimension_numbers<[1], [0], [0], [1], [0, 0, 1, 1], [], []>} : vector<8x32xf32>, vector<32x128xf32>, vector<8x128xf32> -> vector<8x128xf32>
    %28 = vector.broadcast %26 : vector<1x128xf32> to vector<8x128xf32>
    %29 = arith.mulf %27, %28 : vector<8x128xf32>
    %30 = arith.maximumf %18, %29 : vector<8x128xf32>
    %c2 = arith.constant 2 : index
    %c0_15 = arith.constant 0 : index
    %c0_16 = arith.constant 0 : index
    %31 = vector.load %arg3[%c2, %c0_15, %c0_16] : memref<3x32x128xf32, #tpu.memory_space<vmem>>, vector<1x32x128xf32>
    %32 = vector.shape_cast %31 : vector<1x32x128xf32> to vector<32x128xf32>
    %33 = arith.mulf %32, %32 : vector<32x128xf32>
    %cst_17 = arith.constant dense<0.000000e+00> : vector<128xf32>
    %34 = vector.multi_reduction <add>, %33, %cst_17 [0] : vector<32x128xf32> to vector<128xf32>
    %35 = vector.shape_cast %34 : vector<128xf32> to vector<1x128xf32>
    %cst_18 = arith.constant 1.000000e-24 : f32
    %36 = vector.broadcast %cst_18 : f32 to vector<1x128xf32>
    %37 = arith.maximumf %35, %36 : vector<1x128xf32>
    %38 = math.rsqrt %37 : vector<1x128xf32>
    %cst_19 = arith.constant dense<0.000000e+00> : vector<8x128xf32>
    %39 = tpu.matmul %7, %32, %cst_19 {dimension_numbers = #tpu.dot_dimension_numbers<[1], [0], [0], [1], [0, 0, 1, 1], [], []>} : vector<8x32xf32>, vector<32x128xf32>, vector<8x128xf32> -> vector<8x128xf32>
    %40 = vector.broadcast %38 : vector<1x128xf32> to vector<8x128xf32>
    %41 = arith.mulf %39, %40 : vector<8x128xf32>
    %42 = arith.maximumf %30, %41 : vector<8x128xf32>
    %43 = vector.broadcast %6 : vector<8x1xf32> to vector<8x128xf32>
    %44 = arith.mulf %42, %43 : vector<8x128xf32>
    %c0_20 = arith.constant 0 : index
    %c0_21 = arith.constant 0 : index
    %45 = vector.load %arg4[%c0_20, %c0_21] : memref<8x128xf32, #tpu.memory_space<vmem>>, vector<8x128xf32>
    tpu.vector_store %arg4[%c0_20, %c0_21], %44 {strides = array<i32>} : memref<8x128xf32, #tpu.memory_space<vmem>>, vector<8x128xf32>,
    return
  }
  func.func @transform_0(%arg0: i32, %arg1: i32) -> (i32, i32) {
    %c0_i32 = arith.constant 0 : i32
    %c0_i32_0 = arith.constant 0 : i32
    return %arg0, %c0_i32 : i32, i32
  }
  func.func @transform_1(%arg0: i32, %arg1: i32) -> (i32, i32, i32) {
    %c0_i32 = arith.constant 0 : i32
    %c0_i32_0 = arith.constant 0 : i32
    %c0_i32_1 = arith.constant 0 : i32
    return %c0_i32, %c0_i32_0, %arg1 : i32, i32, i32
  }
  func.func @transform_2(%arg0: i32, %arg1: i32) -> (i32, i32) {
    %c0_i32 = arith.constant 0 : i32
    return %arg0, %arg1 : i32, i32
  }
}

</mosaic_0001>

<llo_original>
// kernel: tpu_custom_call.1
$region0: #{tpu_custom_call.1}
  #allocation0 [shape = 'u32[]', space=smem, size = 0x4, offset = 0x4, fixed_abs, tag = 'smem constant byte address 0x4 - core index']
  #allocation1 [shape = 'u32[144,128]{1,0:T(1,128)}', space=vmem, size = 0x12000, scoped, tag = 'internal scratch']
  %s0 = inlined_call_operand.hbm [shape: f32[8,32], index: 0, kind: input, shape index: {}]
  %s1 = inlined_call_operand.hbm [shape: f32[3,32,128], index: 1, kind: input, shape index: {}]
  %s2 = inlined_call_operand.hbm [shape: f32[8,128], index: 2, kind: output, shape index: {}]
  %s3 = sld [smem:[#allocation0]]
  $region26: #{tpu_custom_call.1} parent=0
    _
  %s5 = ssub.s32 1, %s3
  %s6 = scalar_select 0, %s5, %s3
  $region1: #{tpu_custom_call.1} parent=0
    #allocation2 [shape = 'u8[4096]{0}', space=vmem, size = 0x1000, scoped, tag = 'input window, operand 0, single buffered']
    #allocation3 [shape = 's32[1]{0}', space=sflag, size = 0x4, scoped, tag = 'scoped memory for tpu_custom_call.1']
    #allocation4 [shape = 's32[1]{0}', space=sflag, size = 0x4, scoped, tag = 'scoped memory for tpu_custom_call.1']
    #allocation5 [shape = 'u8[49152]{0}', space=vmem, size = 0xc000, scoped, tag = 'input window, operand 1, single buffered']
    #allocation6 [shape = 's32[1]{0}', space=sflag, size = 0x4, scoped, tag = 'scoped memory for tpu_custom_call.1']
    #allocation7 [shape = 'u8[4096]{0}', space=vmem, size = 0x1000, scoped, tag = 'output window, operand 0, single buffered']
    %7 = vsyncpa [#allocation3], 0
    %8 = vsyncpa [#allocation6], 0
    %9 = vsyncpa [#allocation4], 0
    // Predicated region
    $region2: #{tpu_custom_call.1} parent=1 // pred_check
      _
    $region3: #{tpu_custom_call.1} parent=1 // pred_check_branch
      %11 = sbr.rel (0) target = $region5
    $region4: #{tpu_custom_call.1} parent=1 // pred_region
      %s13 = ssub.s32 128, 128
      %14 = vsyncadd [#allocation3], %s13
      %s16 = sshll.u32 [#allocation2], 4
      %s17 = int_to_ptr.vmem [resolvable:$true] %s16
      %19 = dma.hbm_to_vmem [thread:$0]  %s0, 128, %s17, [#allocation3]
    $region5: #{tpu_custom_call.1} parent=1 // pred_fallthru
      _
    // Predicated region
    $region6: #{tpu_custom_call.1} parent=1 // pred_check
      _
    $region7: #{tpu_custom_call.1} parent=1 // pred_check_branch
      %21 = sbr.rel (0) target = $region9
    $region8: #{tpu_custom_call.1} parent=1 // pred_region
      %s23 = ssub.s32 1536, 1536
      %24 = vsyncadd [#allocation6], %s23
      %s25 = sshll.u32 [#allocation5], 4
      %s26 = int_to_ptr.vmem [resolvable:$true] %s25
      %31 = dma.hbm_to_vmem [thread:$0]  %s1, 1536, %s26, [#allocation6], 128, 128, 8
    $region9: #{tpu_custom_call.1} parent=1 // pred_fallthru
      _
    // Predicated region
    $region10: #{tpu_custom_call.1} parent=1 // pred_check
      _
    $region11: #{tpu_custom_call.1} parent=1 // pred_check_branch
      %33 = sbr.rel (0) target = $region13
    $region12: #{tpu_custom_call.1} parent=1 // pred_region
      %34 = dma.done [#allocation3], 128
    $region13: #{tpu_custom_call.1} parent=1 // pred_fallthru
      _
    // Predicated region
    $region14: #{tpu_custom_call.1} parent=1 // pred_check
      _
    $region15: #{tpu_custom_call.1} parent=1 // pred_check_branch
      %36 = sbr.rel (0) target = $region17
    $region16: #{tpu_custom_call.1} parent=1 // pred_region
      %37 = dma.done [#allocation6], 1536
    $region17: #{tpu_custom_call.1} parent=1 // pred_fallthru
      _
    %v38 = vld [vmem:[#allocation2] sm:$0xff]
    %v39 = vmul.f32 %v38, %v38
    %vm40 = vcmask 261120
    %v41 = vsel %vm40, %v39, 0.0
    %42 = vadd.xlane.f32.xlu0 %v41
    %v43 = vpop.xlane.xlu0 %42
    %v44 = vmax.f32 %v43, 1e-24
    %v45 = vrsqrt.pop %v44
    %v46 = vld [vmem:[#allocation5] sm:$0xff]
    %v47 = vld [vmem:[#allocation5 + $0x8] sm:$0xff]
    %v48 = vld [vmem:[#allocation5 + $0x10] sm:$0xff]
    %v49 = vld [vmem:[#allocation5 + $0x18] sm:$0xff]
    %v50 = vmul.f32 %v46, %v46
    %v51 = vmul.f32 %v47, %v47
    %v52 = vmul.f32 %v48, %v48
    %v53 = vmul.f32 %v49, %v49
    %v54 = vadd.f32 %v50, %v51
    %v55 = vadd.f32 %v54, %v52
    %v56 = vadd.f32 %v55, %v53
    %v57 = vrot.slane %v56, 4
    %v58 = vadd.f32 %v56, %v57
    %v59 = vrot.slane %v58, 2
    %v60 = vadd.f32 %v58, %v59
    %v61 = vrot.slane %v60, 1
    %v62 = vadd.f32 %v60, %v61
    %v63 = vmax.f32 %v62, 1e-24
    %v64 = vrsqrt.pop %v63
    %v66 = vsel %vm40, %v38, 0
    %68 = vmatprep.subr.mxu0 0.0
    %69 = vmatpush1.msra.mxu0 %v46
    %70 = vmatprep.subr.mxu0 0.0
    %71 = vmatpush1.msra.mxu0 %v47
    %72 = vmatprep.subr.mxu0 0.0
    %73 = vmatpush1.msra.mxu0 %v48
    %74 = vmatprep.subr.mxu0 0.0
    %75 = vmatpush1.msra.mxu0 %v49
    %76 = vmatprep.subr.mxu0 0.0
    %77 = vmatpush1.msra.mxu0 0.0
    %78 = vmatprep.subr.mxu0 0.0
    %79 = vmatpush1.msra.mxu0 0.0
    %80 = vmatprep.subr.mxu0 0.0
    %81 = vmatpush1.msra.mxu0 0.0
    %82 = vmatprep.subr.mxu0 0.0
    %83 = vmatpush1.msra.mxu0 0.0
    %84 = vmatprep.subr.mxu0 0.0
    %85 = vmatpush1.msra.mxu0 0.0
    %86 = vmatprep.subr.mxu0 0.0
    %87 = vmatpush1.msra.mxu0 0.0
    %88 = vmatprep.subr.mxu0 0.0
    %89 = vmatpush1.msra.mxu0 0.0
    %90 = vmatprep.subr.mxu0 0.0
    %91 = vmatpush1.msra.mxu0 0.0
    %92 = vmatprep.subr.mxu0 0.0
    %93 = vmatpush1.msra.mxu0 0.0
    %94 = vmatprep.subr.mxu0 0.0
    %95 = vmatpush1.msra.mxu0 0.0
    %96 = vmatprep.subr.mxu0 0.0
    %97 = vmatpush1.msra.mxu0 0.0
    %98 = vmatprep.subr.mxu0 0.0
    %99 = vmatpush1.msra.mxu0 0.0
    %100 = vmatprep.subr.mxu0 0.0
    %101 = vmatpush1.msra.mxu0 0.0
    %102 = vmatprep.subr.mxu0 0.0
    %103 = vmatpush1.msra.mxu0 0.0
    %104 = vmatprep.subr.mxu0 0.0
    %105 = vmatpush1.msra.mxu0 0.0
    %106 = vmatprep.subr.mxu0 0.0
    %107 = vmatpush1.msra.mxu0 0.0
    %108 = vmatprep.subr.mxu0 0.0
    %109 = vmatpush1.msra.mxu0 0.0
    %110 = vmatprep.subr.mxu0 0.0
    %111 = vmatpush1.msra.mxu0 0.0
    %112 = vmatprep.subr.mxu0 0.0
    %113 = vmatpush1.msra.mxu0 0.0
    %114 = vmatprep.subr.mxu0 0.0
    %115 = vmatpush1.msra.mxu0 0.0
    %116 = vmatprep.subr.mxu0 0.0
    %117 = vmatpush1.msra.mxu0 0.0
    %118 = vmatprep.subr.mxu0 0.0
    %119 = vmatpush1.msra.mxu0 0.0
    %120 = vmatprep.subr.mxu0 0.0
    %121 = vmatpush1.msra.mxu0 0.0
    %122 = vmatprep.subr.mxu0 0.0
    %123 = vmatpush1.msra.mxu0 0.0
    %124 = vmatprep.subr.mxu0 0.0
    %125 = vmatpush1.msra.mxu0 0.0
    %126 = vmatprep.subr.mxu0 0.0
    %127 = vmatpush1.msra.mxu0 0.0
    %128 = vmatprep.subr.mxu0 0.0
    %129 = vmatpush1.msra.mxu0 0.0
    %130 = vmatprep.subr.mxu0 0.0
    %131 = vmatpush1.msra.mxu0 0.0
    %132 = vmatprep.mubr.f32.mxu0 0.0
    %133 = vmatmul.mubr.f32.gmra.mrb[0].mxu0 %v66
    %v134 = vpop.f32.mrb[0].mxu0
    %v135 = vadd.f32 0.0, %v134
    %v136 = vpop.f32.mrb[0].mxu0
    %137 = vdwg.mxu0
    %v138 = vmul.f32 %v135, %v64
    %s139 = scalar_lea.vmem [#allocation5], 32
    %v140 = vld [vmem:[%s139] sm:$0xff]
    %v141 = vld [vmem:[%s139 + $0x8] sm:$0xff]
    %v142 = vld [vmem:[%s139 + $0x10] sm:$0xff]
    %v143 = vld [vmem:[%s139 + $0x18] sm:$0xff]
    %v144 = vmul.f32 %v140, %v140
    %v145 = vmul.f32 %v141, %v141
    %v146 = vmul.f32 %v142, %v142
    %v147 = vmul.f32 %v143, %v143
    %v148 = vadd.f32 %v144, %v145
    %v149 = vadd.f32 %v148, %v146
    %v150 = vadd.f32 %v149, %v147
    %v151 = vrot.slane %v150, 4
    %v152 = vadd.f32 %v150, %v151
    %v153 = vrot.slane %v152, 2
    %v154 = vadd.f32 %v152, %v153
    %v155 = vrot.slane %v154, 1
    %v156 = vadd.f32 %v154, %v155
    %v157 = vmax.f32 %v156, 1e-24
    %v158 = vrsqrt.pop %v157
    %159 = vmatprep.subr.mxu0 0.0
    %160 = vmatpush1.msra.mxu0 %v140
    %161 = vmatprep.subr.mxu0 0.0
    %162 = vmatpush1.msra.mxu0 %v141
    %163 = vmatprep.subr.mxu0 0.0
    %164 = vmatpush1.msra.mxu0 %v142
    %165 = vmatprep.subr.mxu0 0.0
    %166 = vmatpush1.msra.mxu0 %v143
    %167 = vmatprep.subr.mxu0 0.0
    %168 = vmatpush1.msra.mxu0 0.0
    %169 = vmatprep.subr.mxu0 0.0
    %170 = vmatpush1.msra.mxu0 0.0
    %171 = vmatprep.subr.mxu0 0.0
    %172 = vmatpush1.msra.mxu0 0.0
    %173 = vmatprep.subr.mxu0 0.0
    %174 = vmatpush1.msra.mxu0 0.0
    %175 = vmatprep.subr.mxu0 0.0
    %176 = vmatpush1.msra.mxu0 0.0
    %177 = vmatprep.subr.mxu0 0.0
    %178 = vmatpush1.msra.mxu0 0.0
    %179 = vmatprep.subr.mxu0 0.0
    %180 = vmatpush1.msra.mxu0 0.0
    %181 = vmatprep.subr.mxu0 0.0
    %182 = vmatpush1.msra.mxu0 0.0
    %183 = vmatprep.subr.mxu0 0.0
    %184 = vmatpush1.msra.mxu0 0.0
    %185 = vmatprep.subr.mxu0 0.0
    %186 = vmatpush1.msra.mxu0 0.0
    %187 = vmatprep.subr.mxu0 0.0
    %188 = vmatpush1.msra.mxu0 0.0
    %189 = vmatprep.subr.mxu0 0.0
    %190 = vmatpush1.msra.mxu0 0.0
    %191 = vmatprep.subr.mxu0 0.0
    %192 = vmatpush1.msra.mxu0 0.0
    %193 = vmatprep.subr.mxu0 0.0
    %194 = vmatpush1.msra.mxu0 0.0
    %195 = vmatprep.subr.mxu0 0.0
    %196 = vmatpush1.msra.mxu0 0.0
    %197 = vmatprep.subr.mxu0 0.0
    %198 = vmatpush1.msra.mxu0 0.0
    %199 = vmatprep.subr.mxu0 0.0
    %200 = vmatpush1.msra.mxu0 0.0
    %201 = vmatprep.subr.mxu0 0.0
    %202 = vmatpush1.msra.mxu0 0.0
    %203 = vmatprep.subr.mxu0 0.0
    %204 = vmatpush1.msra.mxu0 0.0
    %205 = vmatprep.subr.mxu0 0.0
    %206 = vmatpush1.msra.mxu0 0.0
    %207 = vmatprep.subr.mxu0 0.0
    %208 = vmatpush1.msra.mxu0 0.0
    %209 = vmatprep.subr.mxu0 0.0
    %210 = vmatpush1.msra.mxu0 0.0
    %211 = vmatprep.subr.mxu0 0.0
    %212 = vmatpush1.msra.mxu0 0.0
    %213 = vmatprep.subr.mxu0 0.0
    %214 = vmatpush1.msra.mxu0 0.0
    %215 = vmatprep.subr.mxu0 0.0
    %216 = vmatpush1.msra.mxu0 0.0
    %217 = vmatprep.subr.mxu0 0.0
    %218 = vmatpush1.msra.mxu0 0.0
    %219 = vmatprep.subr.mxu0 0.0
    %220 = vmatpush1.msra.mxu0 0.0
    %221 = vmatprep.subr.mxu0 0.0
    %222 = vmatpush1.msra.mxu0 0.0
    %223 = vmatprep.mubr.f32.mxu0 0.0
    %224 = vmatmul.mubr.f32.gmra.mrb[0].mxu0 %v66
    %v225 = vpop.f32.mrb[0].mxu0
    %v226 = vadd.f32 0.0, %v225
    %v227 = vpop.f32.mrb[0].mxu0
    %228 = vdwg.mxu0
    %v229 = vmul.f32 %v226, %v158
    %v230 = vmax.f32 %v138, %v229
    %s231 = scalar_lea.vmem [#allocation5], 64
    %v232 = vld [vmem:[%s231] sm:$0xff]
    %v233 = vld [vmem:[%s231 + $0x8] sm:$0xff]
    %v234 = vld [vmem:[%s231 + $0x10] sm:$0xff]
    %v235 = vld [vmem:[%s231 + $0x18] sm:$0xff]
    %v236 = vmul.f32 %v232, %v232
    %v237 = vmul.f32 %v233, %v233
    %v238 = vmul.f32 %v234, %v234
    %v239 = vmul.f32 %v235, %v235
    %v240 = vadd.f32 %v236, %v237
    %v241 = vadd.f32 %v240, %v238
    %v242 = vadd.f32 %v241, %v239
    %v243 = vrot.slane %v242, 4
    %v244 = vadd.f32 %v242, %v243
    %v245 = vrot.slane %v244, 2
    %v246 = vadd.f32 %v244, %v245
    %v247 = vrot.slane %v246, 1
    %v248 = vadd.f32 %v246, %v247
    %v249 = vmax.f32 %v248, 1e-24
    %v250 = vrsqrt.pop %v249
    %251 = vmatprep.subr.mxu0 0.0
    %252 = vmatpush1.msra.mxu0 %v232
    %253 = vmatprep.subr.mxu0 0.0
    %254 = vmatpush1.msra.mxu0 %v233
    %255 = vmatprep.subr.mxu0 0.0
    %256 = vmatpush1.msra.mxu0 %v234
    %257 = vmatprep.subr.mxu0 0.0
    %258 = vmatpush1.msra.mxu0 %v235
    %259 = vmatprep.subr.mxu0 0.0
    %260 = vmatpush1.msra.mxu0 0.0
    %261 = vmatprep.subr.mxu0 0.0
    %262 = vmatpush1.msra.mxu0 0.0
    %263 = vmatprep.subr.mxu0 0.0
    %264 = vmatpush1.msra.mxu0 0.0
    %265 = vmatprep.subr.mxu0 0.0
    %266 = vmatpush1.msra.mxu0 0.0
    %267 = vmatprep.subr.mxu0 0.0
    %268 = vmatpush1.msra.mxu0 0.0
    %269 = vmatprep.subr.mxu0 0.0
    %270 = vmatpush1.msra.mxu0 0.0
    %271 = vmatprep.subr.mxu0 0.0
    %272 = vmatpush1.msra.mxu0 0.0
    %273 = vmatprep.subr.mxu0 0.0
    %274 = vmatpush1.msra.mxu0 0.0
    %275 = vmatprep.subr.mxu0 0.0
    %276 = vmatpush1.msra.mxu0 0.0
    %277 = vmatprep.subr.mxu0 0.0
    %278 = vmatpush1.msra.mxu0 0.0
    %279 = vmatprep.subr.mxu0 0.0
    %280 = vmatpush1.msra.mxu0 0.0
    %281 = vmatprep.subr.mxu0 0.0
    %282 = vmatpush1.msra.mxu0 0.0
    %283 = vmatprep.subr.mxu0 0.0
    %284 = vmatpush1.msra.mxu0 0.0
    %285 = vmatprep.subr.mxu0 0.0
    %286 = vmatpush1.msra.mxu0 0.0
    %287 = vmatprep.subr.mxu0 0.0
    %288 = vmatpush1.msra.mxu0 0.0
    %289 = vmatprep.subr.mxu0 0.0
    %290 = vmatpush1.msra.mxu0 0.0
    %291 = vmatprep.subr.mxu0 0.0
    %292 = vmatpush1.msra.mxu0 0.0
    %293 = vmatprep.subr.mxu0 0.0
    %294 = vmatpush1.msra.mxu0 0.0
    %295 = vmatprep.subr.mxu0 0.0
    %296 = vmatpush1.msra.mxu0 0.0
    %297 = vmatprep.subr.mxu0 0.0
    %298 = vmatpush1.msra.mxu0 0.0
    %299 = vmatprep.subr.mxu0 0.0
    %300 = vmatpush1.msra.mxu0 0.0
    %301 = vmatprep.subr.mxu0 0.0
    %302 = vmatpush1.msra.mxu0 0.0
    %303 = vmatprep.subr.mxu0 0.0
    %304 = vmatpush1.msra.mxu0 0.0
    %305 = vmatprep.subr.mxu0 0.0
    %306 = vmatpush1.msra.mxu0 0.0
    %307 = vmatprep.subr.mxu0 0.0
    %308 = vmatpush1.msra.mxu0 0.0
    %309 = vmatprep.subr.mxu0 0.0
    %310 = vmatpush1.msra.mxu0 0.0
    %311 = vmatprep.subr.mxu0 0.0
    %312 = vmatpush1.msra.mxu0 0.0
    %313 = vmatprep.subr.mxu0 0.0
    %314 = vmatpush1.msra.mxu0 0.0
    %315 = vmatprep.mubr.f32.mxu0 0.0
    %316 = vmatmul.mubr.f32.gmra.mrb[0].mxu0 %v66
    %v317 = vpop.f32.mrb[0].mxu0
    %v318 = vadd.f32 0.0, %v317
    %v319 = vpop.f32.mrb[0].mxu0
    %320 = vdwg.mxu0
    %v321 = vmul.f32 %v318, %v250
    %v322 = vmax.f32 %v230, %v321
    %v323 = vmul.f32 %v322, %v45
    %324 = vst [vmem:[#allocation7] sm:$0xff] %v323
    // Predicated region
    $region18: #{tpu_custom_call.1} parent=1 // pred_check
      _
    $region19: #{tpu_custom_call.1} parent=1 // pred_check_branch
      %326 = sbr.rel (0) target = $region21
    $region20: #{tpu_custom_call.1} parent=1 // pred_region
      %s328 = ssub.s32 128, 128
      %329 = vsyncadd [#allocation4], %s328
      %s331 = sshll.u32 [#allocation7], 4
      %s332 = int_to_ptr.vmem [resolvable:$true] %s331
      %334 = dma.vmem_to_hbm [thread:$0]  %s332, 128, %s2, [#allocation4]
    $region21: #{tpu_custom_call.1} parent=1 // pred_fallthru
      _
    // Predicated region
    $region22: #{tpu_custom_call.1} parent=1 // pred_check
      _
    $region23: #{tpu_custom_call.1} parent=1 // pred_check_branch
      %336 = sbr.rel (0) target = $region25
    $region24: #{tpu_custom_call.1} parent=1 // pred_region
      %337 = dma.done [#allocation4], 128
    $region25: #{tpu_custom_call.1} parent=1 // pred_fallthru
      _
    %338 = vsyncpa [#allocation3], 1
    %339 = vsyncpa [#allocation6], 1
    %340 = vsyncpa [#allocation4], 1

</llo_original>
